<compile_context>
chip_gen: v5e
topology: v5e:2x2
jax: 0.10.0
libtpu: 0.0.40
codegen_flags: <defaults>
</compile_context>

<pallas_src>
import functools

import jax
import jax.numpy as jnp
from jax.experimental import pallas as pl
from jax.experimental.pallas import tpu as pltpu


def _mml_kernel(x_ref, t_ref, *rest, p, margin, n_rows, has_weight, reduction,
                need_mask):
    if has_weight:
        w_ref, out_ref = rest
    else:
        (out_ref,) = rest

    x = x_ref[...].astype(jnp.float32)              # (T, C) f32 compute
    t = t_ref[...]                                  # (T, 1) i32
    tile_n, c = x.shape

    # correct_scores = x[n, target[n]] via masked row-reduction (no gather).
    cls = jax.lax.broadcasted_iota(jnp.int32, (tile_n, c), 1)
    is_tgt = cls == t
    correct = jnp.sum(jnp.where(is_tgt, x, 0.0), axis=-1, keepdims=True)  # (T,1)

    hinge = jnp.maximum(margin - (correct - x), 0.0)    # (T, C)
    if p == 2:
        hinge = hinge * hinge
    # p == 1 -> identity (only p in {1, 2} supported).

    # Sum over ALL classes, then subtract the constant i == target term:
    # clamp(margin - 0, min=0) ** p == max(margin, 0) ** p. Exact algebra;
    # removes a full (T, C) select per tile.
    tgt_term = jnp.float32(float(max(margin, 0.0)) ** p)
    per_sample = jnp.sum(hinge, axis=-1, keepdims=True) - tgt_term        # (T,1)

    if has_weight:
        per_sample = per_sample * w_ref[...].astype(jnp.float32)

    if reduction in ("mean", "sum"):
        if need_mask:
            # Zero rows past the true batch size (partial last tile).
            rows = (pl.program_id(0) * tile_n
                    + jax.lax.broadcasted_iota(jnp.int32, (tile_n, 1), 0))
            per_sample = jnp.where(rows < n_rows, per_sample, 0.0)
        partial = jnp.sum(per_sample, keepdims=True)                      # (1,1)
        # Lane-dense per-tile partial block: one unmasked vst, keeps the grid
        # axis "parallel" (no shared (1,1) accumulator block).
        out_ref[...] = jnp.broadcast_to(partial, out_ref.shape)           # (8,128)
    else:  # 'none'
        out_ref[...] = per_sample.astype(out_ref.dtype)


def _pick_tile_n(n, c, itemsize):
    """Largest batch tile whose double-buffered x slab fits scoped VMEM on all
    generations (conservative for v7x: 64 MiB physical / 32 MiB scoped)."""
    budget_per_buf = 6 * 1024 * 1024          # bytes for one x tile
    tile = budget_per_buf // max(c * itemsize, 1)
    tile = max(8, min(1024, int(tile)))
    tile -= tile % 8
    n_pad8 = ((n + 7) // 8) * 8               # no point exceeding padded batch
    tile = min(tile, n_pad8)
    return max(tile, 8)


def multi_margin_loss(x, target, *, p=1, margin=1.0, weight=None,
                      reduction="mean", tile_n=None):
    """Pallas implementation of CustomMultiMarginLoss.forward."""
    if x.ndim != 2:
        raise ValueError("Expected 2D input tensor")
    if p not in (1, 2):
        raise ValueError("only p in {1, 2} supported")
    n, c = x.shape
    in_dtype = x.dtype

    if tile_n is None:
        tile_n = _pick_tile_n(n, c, jnp.dtype(x.dtype).itemsize)
    else:
        tile_n = max(8, (int(tile_n) // 8) * 8)
    num_tiles = pl.cdiv(n, tile_n)
    need_mask = (n % tile_n) != 0

    t2d = target.astype(jnp.int32).reshape(n, 1)

    in_specs = [
        pl.BlockSpec((tile_n, c), lambda i: (i, 0)),   # x tile
        pl.BlockSpec((tile_n, 1), lambda i: (i, 0)),   # target tile
    ]
    args = [x, t2d]

    has_weight = weight is not None
    if has_weight:
        # Glue: gather per-sample class weight outside the kernel (tiny array).
        w2d = weight.astype(jnp.float32)[target].reshape(n, 1)
        in_specs.append(pl.BlockSpec((tile_n, 1), lambda i: (i, 0)))
        args.append(w2d)

    if reduction in ("mean", "sum"):
        # One lane-dense (8,128) partial-sum block per tile.
        out_shape = jax.ShapeDtypeStruct((num_tiles * 8, 128), jnp.float32)
        out_specs = pl.BlockSpec((8, 128), lambda i: (i, 0))
    else:
        out_shape = jax.ShapeDtypeStruct((n, 1), jnp.float32)
        out_specs = pl.BlockSpec((tile_n, 1), lambda i: (i, 0))

    kernel = functools.partial(
        _mml_kernel, p=p, margin=float(margin), n_rows=n,
        has_weight=has_weight, reduction=reduction, need_mask=need_mask)

    out = pl.pallas_call(
        kernel,
        out_shape=out_shape,
        grid=(num_tiles,),
        in_specs=in_specs,
        out_specs=out_specs,
        compiler_params=pltpu.CompilerParams(
            dimension_semantics=("parallel",),
            vmem_limit_bytes=32 * 1024 * 1024),
    )(*args)

    if reduction in ("mean", "sum"):
        partials = out[0::8, 0]                       # (num_tiles,)
        total = jnp.sum(partials)
        if reduction == "mean":
            total = total / n
        return total.astype(in_dtype)
    return out[:, 0].astype(in_dtype)


def _reference(x, target, *, p=1, margin=1.0, weight=None, reduction="mean"):
    """Pure-JAX reference mirroring the PyTorch module line-by-line."""
    x = x.astype(jnp.float32)
    n, c = x.shape
    correct = x[jnp.arange(n), target]                       # (N,)
    diff = jnp.maximum(margin - (correct[:, None] - x), 0.0) ** p
    mask = jnp.arange(c)[None, :] != target[:, None]
    loss = jnp.sum(jnp.where(mask, diff, 0.0), axis=-1)
    if weight is not None:
        loss = loss * weight.astype(jnp.float32)[target]
    if reduction == "mean":
        return loss.mean()
    if reduction == "sum":
        return loss.sum()
    return loss


if __name__ == "__main__":
    key = jax.random.PRNGKey(0)
    k_x, k_t, k_w, k_x2, k_t2 = jax.random.split(key, 5)

    N, C = 8, 16
    x = jax.random.normal(k_x, (N, C), dtype=jnp.float32)
    target = jax.random.randint(k_t, (N,), 0, C, dtype=jnp.int32)
    weight = jax.random.uniform(k_w, (C,), dtype=jnp.float32) + 0.5

    ok = True

    def check(got, want, tag, rtol=1e-5, atol=1e-5):
        global ok
        got = jax.block_until_ready(got)
        if not jnp.allclose(jnp.asarray(got, jnp.float32), want,
                            rtol=rtol, atol=atol):
            ok = False
            print("MISMATCH", tag, got, want)

    # Single-tile cases (auto tile size).
    for p, w, red in [(1, None, "mean"), (2, weight, "sum"),
                      (1, weight, "none")]:
        got = multi_margin_loss(x, target, p=p, margin=1.0, weight=w,
                                reduction=red)
        want = _reference(x, target, p=p, margin=1.0, weight=w, reduction=red)
        check(got, want, f"p={p} red={red}")

    # Multi-tile + partial last tile (forced tile_n=8, N=20 -> 3 tiles).
    N2 = 20
    x2 = jax.random.normal(k_x2, (N2, C), dtype=jnp.float32)
    t2 = jax.random.randint(k_t2, (N2,), 0, C, dtype=jnp.int32)
    for p, w, red in [(2, weight, "sum"), (1, None, "mean"),
                      (1, weight, "none")]:
        got = multi_margin_loss(x2, t2, p=p, margin=0.75, weight=w,
                                reduction=red, tile_n=8)
        want = _reference(x2, t2, p=p, margin=0.75, weight=w, reduction=red)
        check(got, want, f"multi-tile p={p} red={red}")

    # bf16 input path (no wrapper-side f32 copy; compute in f32 in-kernel).
    x_bf16 = x.astype(jnp.bfloat16)
    got = multi_margin_loss(x_bf16, target, p=1, margin=1.0, reduction="mean")
    want = _reference(x_bf16.astype(jnp.float32), target, p=1, margin=1.0,
                      reduction="mean")
    check(got, want, "bf16 mean", rtol=2e-2, atol=2e-2)

    if ok:
        print("KERNEL_OK")
</pallas_src>

<mosaic_0001>
module attributes {stable_mosaic.version = 11 : i64} {
  func.func @_mml_kernel(%arg0: i32, %arg1: memref<8x16xf32, #tpu.memory_space<vmem>>, %arg2: memref<8x1xi32, #tpu.memory_space<vmem>>, %arg3: memref<8x128xf32, #tpu.memory_space<vmem>>) attributes {dimension_semantics = [#tpu.dimension_semantics<parallel>], iteration_bounds = array<i64: 1>, scalar_prefetch = 0 : i64, scratch_operands = 0 : i64, tpu.core_type = #tpu.core_type<tc>, window_params = [{transform_indices = @transform_0, window_bounds = array<i64: 8, 16>}, {transform_indices = @transform_1, window_bounds = array<i64: 8, 1>}, {transform_indices = @transform_2, window_bounds = array<i64: 8, 128>}]} {
    %c0 = arith.constant 0 : index
    %c0_0 = arith.constant 0 : index
    %0 = vector.load %arg1[%c0, %c0_0] : memref<8x16xf32, #tpu.memory_space<vmem>>, vector<8x16xf32>
    %c0_1 = arith.constant 0 : index
    %c0_2 = arith.constant 0 : index
    %1 = vector.load %arg2[%c0_1, %c0_2] : memref<8x1xi32, #tpu.memory_space<vmem>>, vector<8x1xi32>
    %2 = tpu.iota {dimensions = array<i32: 1>} : vector<8x16xi32>
    %3 = vector.broadcast %1 : vector<8x1xi32> to vector<8x16xi32>
    %4 = arith.cmpi eq, %2, %3 : vector<8x16xi32>
    %cst = arith.constant 0.000000e+00 : f32
    %5 = vector.broadcast %cst : f32 to vector<8x16xf32>
    %6 = arith.select %4, %0, %5 : vector<8x16xi1>, vector<8x16xf32>
    %cst_3 = arith.constant dense<0.000000e+00> : vector<8xf32>
    %7 = vector.multi_reduction <add>, %6, %cst_3 [1] : vector<8x16xf32> to vector<8xf32>
    %8 = vector.shape_cast %7 : vector<8xf32> to vector<8x1xf32>
    %9 = vector.broadcast %8 : vector<8x1xf32> to vector<8x16xf32>
    %10 = arith.subf %9, %0 : vector<8x16xf32>
    %cst_4 = arith.constant 1.000000e+00 : f32
    %11 = vector.broadcast %cst_4 : f32 to vector<8x16xf32>
    %12 = arith.subf %11, %10 : vector<8x16xf32>
    %cst_5 = arith.constant 0.000000e+00 : f32
    %13 = vector.broadcast %cst_5 : f32 to vector<8x16xf32>
    %14 = arith.maximumf %12, %13 : vector<8x16xf32>
    %cst_6 = arith.constant dense<0.000000e+00> : vector<8xf32>
    %15 = vector.multi_reduction <add>, %14, %cst_6 [1] : vector<8x16xf32> to vector<8xf32>
    %16 = vector.shape_cast %15 : vector<8xf32> to vector<8x1xf32>
    %cst_7 = arith.constant 1.000000e+00 : f32
    %17 = vector.broadcast %cst_7 : f32 to vector<8x1xf32>
    %18 = arith.subf %16, %17 : vector<8x1xf32>
    %19 = vector.shape_cast %18 : vector<8x1xf32> to vector<1x8x1xf32>
    %cst_8 = arith.constant dense<0.000000e+00> : vector<1xf32>
    %20 = vector.multi_reduction <add>, %19, %cst_8 [1, 2] : vector<1x8x1xf32> to vector<1xf32>
    %21 = vector.shape_cast %20 : vector<1xf32> to vector<1x1x1xf32>
    %22 = vector.extract %21[0, 0, 0] : f32 from vector<1x1x1xf32>
    %23 = vector.broadcast %22 : f32 to vector<1x1xf32>
    %24 = vector.shape_cast %23 : vector<1x1xf32> to vector<1x1xf32>
    %25 = vector.broadcast %24 : vector<1x1xf32> to vector<8x128xf32>
    %c0_9 = arith.constant 0 : index
    %c0_10 = arith.constant 0 : index
    %26 = vector.load %arg3[%c0_9, %c0_10] : memref<8x128xf32, #tpu.memory_space<vmem>>, vector<8x128xf32>
    tpu.vector_store %arg3[%c0_9, %c0_10], %25 {strides = array<i32>} : memref<8x128xf32, #tpu.memory_space<vmem>>, vector<8x128xf32>,
    return
  }
  func.func @transform_0(%arg0: i32) -> (i32, i32) {
    %c0_i32 = arith.constant 0 : i32
    %c0_i32_0 = arith.constant 0 : i32
    return %arg0, %c0_i32 : i32, i32
  }
  func.func @transform_1(%arg0: i32) -> (i32, i32) {
    %c0_i32 = arith.constant 0 : i32
    %c0_i32_0 = arith.constant 0 : i32
    return %arg0, %c0_i32 : i32, i32
  }
  func.func @transform_2(%arg0: i32) -> (i32, i32) {
    %c0_i32 = arith.constant 0 : i32
    %c0_i32_0 = arith.constant 0 : i32
    return %arg0, %c0_i32 : i32, i32
  }
}

</mosaic_0001>

<llo_original>
// kernel: tpu_custom_call.1
$region0: #{tpu_custom_call.1}
  #allocation0 [shape = 'u32[]', space=smem, size = 0x4, offset = 0x4, fixed_abs, tag = 'smem constant byte address 0x4 - core index']
  #allocation1 [shape = 'u32[72,128]{1,0:T(1,128)}', space=vmem, size = 0x9000, scoped, tag = 'internal scratch']
  %s0 = inlined_call_operand.vmem [shape: f32[8,16], index: 0, kind: input, shape index: {}]
  %s1 = inlined_call_operand.vmem [shape: s32[8,1], index: 1, kind: input, shape index: {}]
  %s2 = inlined_call_operand.hbm [shape: f32[8,128], index: 2, kind: output, shape index: {}]
  %s3 = sld [smem:[#allocation0]]
  $region18: #{tpu_custom_call.1} parent=0
    _
  %s5 = ssub.s32 1, %s3
  %s6 = scalar_select 0, %s5, %s3
  $region1: #{tpu_custom_call.1} parent=0
    #allocation2 [shape = 'u8[4096]{0}', space=vmem, size = 0x1000, scoped, tag = 'output window, operand 0, single buffered']
    #allocation3 [shape = 's32[1]{0}', space=sflag, size = 0x4, scoped, tag = 'scoped memory for tpu_custom_call.1']
    %7 = vsyncpa [#allocation3], 0
    // Predicated region
    $region2: #{tpu_custom_call.1} parent=1 // pred_check
      _
    $region3: #{tpu_custom_call.1} parent=1 // pred_check_branch
      %9 = sbr.rel (0) target = $region5
    $region4: #{tpu_custom_call.1} parent=1 // pred_region
      _
    $region5: #{tpu_custom_call.1} parent=1 // pred_fallthru
      _
    // Predicated region
    $region6: #{tpu_custom_call.1} parent=1 // pred_check
      _
    $region7: #{tpu_custom_call.1} parent=1 // pred_check_branch
      %11 = sbr.rel (0) target = $region9
    $region8: #{tpu_custom_call.1} parent=1 // pred_region
      _
    $region9: #{tpu_custom_call.1} parent=1 // pred_fallthru
      _
    %v12 = vld [vmem:[%s0] sm:$0xff]
    %v13 = vld [vmem:[%s1] sm:$0xff]
    %v14 = vlaneseq
    %v15 = vand.u32 %v14, 127
    %16 = vset.pattern.permute.xlu0 0
    %17 = vperm.xlu0 %16, %v13
    %v18 = vpop.permute.xlu0 %17
    %vm19 = vcmp.eq.s32.totalorder %v15, %v18
    %v20 = vsel %vm19, %v12, 0.0
    %vm21 = vcmask 130048
    %v22 = vsel %vm21, %v20, 0.0
    %23 = vadd.xlane.f32.xlu0 %v22
    %v24 = vpop.xlane.xlu0 %23
    %v25 = vsub.f32 %v24, %v12
    %v26 = vsub.f32 1.0, %v25
    %v27 = vmax.f32 %v26, 0.0
    %v28 = vsel %vm21, %v27, 0.0
    %29 = vadd.xlane.f32.xlu0 %v28
    %v30 = vpop.xlane.xlu0 %29
    %v31 = vsub.f32 %v30, 1.0
    %vm32 = vcmask 7168
    %v33 = vsel %vm32, %v31, 0.0
    %34 = vadd.xlane.f32.xlu0 %v33
    %v35 = vpop.xlane.xlu0 %34
    %v36 = vrot.slane %v35, 4
    %v37 = vadd.f32 %v35, %v36
    %v38 = vrot.slane %v37, 2
    %v39 = vadd.f32 %v37, %v38
    %v40 = vrot.slane %v39, 1
    %v41 = vadd.f32 %v39, %v40
    %s42 = vtos %v41
    %v43 = vstv %s42
    %44 = vst [vmem:[#allocation2] sm:$0xff] %v43
    // Predicated region
    $region10: #{tpu_custom_call.1} parent=1 // pred_check
      _
    $region11: #{tpu_custom_call.1} parent=1 // pred_check_branch
      %46 = sbr.rel (0) target = $region13
    $region12: #{tpu_custom_call.1} parent=1 // pred_region
      %48 = vsyncadd [#allocation3], 0
      %s50 = sshll.u32 [#allocation2], 4
      %s51 = int_to_ptr.vmem [resolvable:$true] %s50
      %s52 = sshll.u32 %s2, 4
      %s53 = int_to_ptr.hbm [resolvable:$true] %s52
      %55 = dma.vmem_to_hbm [thread:$0]  %s51, 128, %s53, [#allocation3]
    $region13: #{tpu_custom_call.1} parent=1 // pred_fallthru
      _
    // Predicated region
    $region14: #{tpu_custom_call.1} parent=1 // pred_check
      _
    $region15: #{tpu_custom_call.1} parent=1 // pred_check_branch
      %57 = sbr.rel (0) target = $region17
    $region16: #{tpu_custom_call.1} parent=1 // pred_region
      %59 = dma.done [#allocation3], 128
    $region17: #{tpu_custom_call.1} parent=1 // pred_fallthru
      _
    %60 = vsyncpa [#allocation3], 1

</llo_original>
